<compile_context>
chip_gen: v5e
topology: v5e:2x2
jax: 0.10.0
libtpu: 0.0.40
codegen_flags: <defaults>
</compile_context>

<pallas_src>
import functools

import jax
import jax.numpy as jnp
from jax.experimental import pallas as pl
from jax.experimental.pallas import tpu as pltpu

_LANE = 128
_VMEM_LIMIT_BYTES = 32 * 1024 * 1024          # safe on v5e/v6e/v7x physical VMEM
_TARGET_INPUT_BYTES = 6 * 1024 * 1024         # ~4-8 MiB of input per grid step
_MAX_STEP_FOOTPRINT = 20 * 1024 * 1024        # 2x(double-buffered in+out) cap


def _outconv_kernel(x_ref, w_ref, b_ref, o_ref):
    # x_ref: (1, C_in, TP)   w_ref: (C_out, C_in)   b_ref: (C_out, 1)
    # o_ref: (1, C_out, TP)
    x = x_ref[0]                                           # (C_in, TP)
    c_out, c_in = w_ref.shape
    if c_in <= 8 and c_out <= 8:
        # Tiny contraction: unrolled VPU broadcast-MAC (no MXU push/pop latency).
        w = w_ref[...].astype(jnp.float32)                 # (C_out, C_in), VMEM-resident
        xf = x.astype(jnp.float32)
        acc = jnp.zeros((c_out, x.shape[-1]), jnp.float32)
        for c in range(c_in):                              # short, fully unrolled
            acc = acc + w[:, c:c + 1] * xf[c:c + 1, :]     # (C_out,1)*(1,TP) -> (C_out,TP)
    else:
        acc = jnp.dot(w_ref[...], x, preferred_element_type=jnp.float32)
    o_ref[0] = (acc + b_ref[...]).astype(o_ref.dtype)


def _pick_pixel_tile(hw: int, c_in: int, c_out: int, itemsize: int, n_batch: int) -> int:
    """Byte-budget-driven, lane-aligned pixel tile (static Python ints)."""
    bytes_per_pix_in = max(c_in * itemsize, 1)
    bytes_per_pix_io = max((c_in + c_out) * itemsize, 1)

    # Desired tile from the per-step input-byte budget.
    tp = _TARGET_INPUT_BYTES // bytes_per_pix_in
    # Cap so the double-buffered (in + out) footprint fits the scoped VMEM limit.
    tp = min(tp, _MAX_STEP_FOOTPRINT // (2 * bytes_per_pix_io))
    # Batch-1: keep >= 2 pixel tiles so both v7x TensorCores get work.
    if n_batch == 1 and hw >= 2 * _LANE:
        tp = min(tp, hw // 2)
    tp = min(tp, hw)

    if tp >= hw:
        return hw                                  # full extent is always legal
    # Lane-align (never emit a block whose lane dim is neither 128-aligned
    # nor the full extent).
    tp = max(_LANE, (tp // _LANE) * _LANE)
    # Prefer a divisor of hw: clean grid, no ragged tail, unmasked stores.
    t = tp
    while t >= _LANE:
        if hw % t == 0:
            return t
        t -= _LANE
    return tp                                      # ragged tail; Pallas masks OOB lanes


@jax.jit
def outconv_forward(x_nchw, weight, bias):
    """1x1 Conv2d (OutConv.forward).

    x_nchw:  (N, C_in, H, W)
    weight:  (C_out, C_in, 1, 1)   -- PyTorch Conv2d weight layout
    bias:    (C_out,)
    returns: (N, C_out, H, W)
    """
    N, C_in, H, W = x_nchw.shape
    C_out = weight.shape[0]
    HW = H * W

    # Free reshapes (no transpose, no copy): stay in NCHW channel order.
    x3 = x_nchw.reshape(N, C_in, HW)          # (N, C_in, HW)
    w2d = weight.reshape(C_out, C_in)         # native (C_out, C_in)
    b2d = bias.reshape(C_out, 1)              # broadcasts over the lane (pixel) axis

    itemsize = jnp.dtype(x_nchw.dtype).itemsize
    tp = _pick_pixel_tile(HW, C_in, C_out, itemsize, N)
    num_pix_tiles = pl.cdiv(HW, tp)
    grid = (N, num_pix_tiles)

    out3 = pl.pallas_call(
        _outconv_kernel,
        out_shape=jax.ShapeDtypeStruct((N, C_out, HW), x_nchw.dtype),
        grid=grid,
        in_specs=[
            pl.BlockSpec((1, C_in, tp), lambda n, p: (n, 0, p)),
            pl.BlockSpec((C_out, C_in), lambda n, p: (0, 0)),   # VMEM-resident
            pl.BlockSpec((C_out, 1), lambda n, p: (0, 0)),      # VMEM-resident
        ],
        out_specs=pl.BlockSpec((1, C_out, tp), lambda n, p: (n, 0, p)),
        compiler_params=pltpu.CompilerParams(
            dimension_semantics=("parallel", "parallel"),
            vmem_limit_bytes=_VMEM_LIMIT_BYTES,
        ),
    )(x3, w2d, b2d)

    return out3.reshape(N, C_out, H, W)


if __name__ == "__main__":
    # Small shapes consistent with OutConv(in_channels=4, out_channels=3)
    N, C_in, C_out, H, W = 2, 4, 3, 16, 16

    key = jax.random.PRNGKey(0)
    kx, kw, kb = jax.random.split(key, 3)

    x = jax.random.normal(kx, (N, C_in, H, W), dtype=jnp.float32)
    # PyTorch Conv2d parameter shapes: (C_out, C_in, 1, 1), (C_out,)
    bound = 1.0 / (C_in ** 0.5)
    weight = jax.random.uniform(kw, (C_out, C_in, 1, 1), jnp.float32, -bound, bound)
    bias = jax.random.uniform(kb, (C_out,), jnp.float32, -bound, bound)

    y = outconv_forward(x, weight, bias)
    jax.block_until_ready(y)

    # Reference check: 1x1 conv == einsum over channels + bias
    y_ref = (jnp.einsum("nchw,oc->nohw", x, weight.reshape(C_out, C_in))
             + bias[None, :, None, None])
    assert y.shape == (N, C_out, H, W)
    assert jnp.allclose(y, y_ref, atol=1e-5, rtol=1e-5)

    print("KERNEL_OK")
</pallas_src>

<mosaic_0001>
module attributes {stable_mosaic.version = 11 : i64} {
  func.func @_outconv_kernel(%arg0: i32, %arg1: i32, %arg2: memref<1x4x256xf32, #tpu.memory_space<vmem>>, %arg3: memref<3x4xf32, #tpu.memory_space<vmem>>, %arg4: memref<3x1xf32, #tpu.memory_space<vmem>>, %arg5: memref<1x3x256xf32, #tpu.memory_space<vmem>>) attributes {dimension_semantics = [#tpu.dimension_semantics<parallel>, #tpu.dimension_semantics<parallel>], iteration_bounds = array<i64: 2, 1>, scalar_prefetch = 0 : i64, scratch_operands = 0 : i64, tpu.core_type = #tpu.core_type<tc>, window_params = [{transform_indices = @transform_0, window_bounds = array<i64: 1, 4, 256>}, {pipeline_mode = #tpu.pipeline_mode<synchronous>, transform_indices = @transform_1, window_bounds = array<i64: 3, 4>}, {pipeline_mode = #tpu.pipeline_mode<synchronous>, transform_indices = @transform_2, window_bounds = array<i64: 3, 1>}, {transform_indices = @transform_3, window_bounds = array<i64: 1, 3, 256>}]} {
    %c0 = arith.constant 0 : index
    %c0_0 = arith.constant 0 : index
    %c0_1 = arith.constant 0 : index
    %0 = vector.load %arg2[%c0, %c0_0, %c0_1] : memref<1x4x256xf32, #tpu.memory_space<vmem>>, vector<1x4x256xf32>
    %1 = vector.shape_cast %0 : vector<1x4x256xf32> to vector<4x256xf32>
    %c0_2 = arith.constant 0 : index
    %c0_3 = arith.constant 0 : index
    %2 = vector.load %arg3[%c0_2, %c0_3] : memref<3x4xf32, #tpu.memory_space<vmem>>, vector<3x4xf32>
    %cst = arith.constant 0.000000e+00 : f32
    %3 = vector.broadcast %cst : f32 to vector<3x256xf32>
    %4 = vector.extract_strided_slice %2 {offsets = [0, 0], sizes = [3, 1], strides = [1, 1]} : vector<3x4xf32> to vector<3x1xf32>
    %5 = vector.extract_strided_slice %1 {offsets = [0, 0], sizes = [1, 256], strides = [1, 1]} : vector<4x256xf32> to vector<1x256xf32>
    %6 = vector.broadcast %4 : vector<3x1xf32> to vector<3x256xf32>
    %7 = vector.broadcast %5 : vector<1x256xf32> to vector<3x256xf32>
    %8 = arith.mulf %6, %7 : vector<3x256xf32>
    %9 = arith.addf %3, %8 : vector<3x256xf32>
    %10 = vector.extract_strided_slice %2 {offsets = [0, 1], sizes = [3, 1], strides = [1, 1]} : vector<3x4xf32> to vector<3x1xf32>
    %11 = vector.extract_strided_slice %1 {offsets = [1, 0], sizes = [1, 256], strides = [1, 1]} : vector<4x256xf32> to vector<1x256xf32>
    %12 = vector.broadcast %10 : vector<3x1xf32> to vector<3x256xf32>
    %13 = vector.broadcast %11 : vector<1x256xf32> to vector<3x256xf32>
    %14 = arith.mulf %12, %13 : vector<3x256xf32>
    %15 = arith.addf %9, %14 : vector<3x256xf32>
    %16 = vector.extract_strided_slice %2 {offsets = [0, 2], sizes = [3, 1], strides = [1, 1]} : vector<3x4xf32> to vector<3x1xf32>
    %17 = vector.extract_strided_slice %1 {offsets = [2, 0], sizes = [1, 256], strides = [1, 1]} : vector<4x256xf32> to vector<1x256xf32>
    %18 = vector.broadcast %16 : vector<3x1xf32> to vector<3x256xf32>
    %19 = vector.broadcast %17 : vector<1x256xf32> to vector<3x256xf32>
    %20 = arith.mulf %18, %19 : vector<3x256xf32>
    %21 = arith.addf %15, %20 : vector<3x256xf32>
    %22 = vector.extract_strided_slice %2 {offsets = [0, 3], sizes = [3, 1], strides = [1, 1]} : vector<3x4xf32> to vector<3x1xf32>
    %23 = vector.extract_strided_slice %1 {offsets = [3, 0], sizes = [1, 256], strides = [1, 1]} : vector<4x256xf32> to vector<1x256xf32>
    %24 = vector.broadcast %22 : vector<3x1xf32> to vector<3x256xf32>
    %25 = vector.broadcast %23 : vector<1x256xf32> to vector<3x256xf32>
    %26 = arith.mulf %24, %25 : vector<3x256xf32>
    %27 = arith.addf %21, %26 : vector<3x256xf32>
    %c0_4 = arith.constant 0 : index
    %c0_5 = arith.constant 0 : index
    %28 = vector.load %arg4[%c0_4, %c0_5] : memref<3x1xf32, #tpu.memory_space<vmem>>, vector<3x1xf32>
    %29 = vector.broadcast %28 : vector<3x1xf32> to vector<3x256xf32>
    %30 = arith.addf %27, %29 : vector<3x256xf32>
    %c0_6 = arith.constant 0 : index
    %c0_7 = arith.constant 0 : index
    %c0_8 = arith.constant 0 : index
    %31 = vector.load %arg5[%c0_6, %c0_7, %c0_8] : memref<1x3x256xf32, #tpu.memory_space<vmem>>, vector<1x3x256xf32>
    %32 = vector.shape_cast %31 : vector<1x3x256xf32> to vector<3x256xf32>
    %33 = vector.shape_cast %30 : vector<3x256xf32> to vector<1x3x256xf32>
    tpu.vector_store %arg5[%c0_6, %c0_7, %c0_8], %33 {strides = array<i32>} : memref<1x3x256xf32, #tpu.memory_space<vmem>>, vector<1x3x256xf32>,
    return
  }
  func.func @transform_0(%arg0: i32, %arg1: i32) -> (i32, i32, i32) {
    %c0_i32 = arith.constant 0 : i32
    %c0_i32_0 = arith.constant 0 : i32
    return %arg0, %c0_i32, %arg1 : i32, i32, i32
  }
  func.func @transform_1(%arg0: i32, %arg1: i32) -> (i32, i32) {
    %c0_i32 = arith.constant 0 : i32
    %c0_i32_0 = arith.constant 0 : i32
    %c0_i32_1 = arith.constant 0 : i32
    return %c0_i32, %c0_i32_0 : i32, i32
  }
  func.func @transform_2(%arg0: i32, %arg1: i32) -> (i32, i32) {
    %c0_i32 = arith.constant 0 : i32
    %c0_i32_0 = arith.constant 0 : i32
    %c0_i32_1 = arith.constant 0 : i32
    return %c0_i32, %c0_i32_0 : i32, i32
  }
  func.func @transform_3(%arg0: i32, %arg1: i32) -> (i32, i32, i32) {
    %c0_i32 = arith.constant 0 : i32
    %c0_i32_0 = arith.constant 0 : i32
    return %arg0, %c0_i32, %arg1 : i32, i32, i32
  }
}

</mosaic_0001>

<llo_original>
// kernel: outconv_forward.1
$region0: #{outconv_forward.1}
  #allocation0 [shape = 'u32[]', space=smem, size = 0x4, offset = 0x4, fixed_abs, tag = 'smem constant byte address 0x4 - core index']
  #allocation1 [shape = 'u32[72,128]{1,0:T(1,128)}', space=vmem, size = 0x9000, scoped, tag = 'internal scratch']
  %s0 = inlined_call_operand.vmem [shape: f32[2,4,256], index: 0, kind: input, shape index: {}]
  %s1 = inlined_call_operand.vmem [shape: f32[3,4], index: 1, kind: input, shape index: {}]
  %s2 = inlined_call_operand.vmem [shape: f32[3,1], index: 2, kind: input, shape index: {}]
  %s3 = inlined_call_operand.vmem [shape: f32[2,3,256], index: 3, kind: output, shape index: {}]
  %s4 = sld [smem:[#allocation0]]
  $region45: #{outconv_forward.1} parent=0
    _
  %s6 = ssub.s32 1, %s4
  %s7 = scalar_select 0, %s6, %s4
  loop: start=0, step=1, limit=4
  $region2: #{outconv_forward.1} parent=0 // loop_pre_header
    _
  $region3: #{outconv_forward.1} parent=0 // loop_header
    %s9 = sphi 0, %s13
    %p10 = scmp.ge.s32.totalorder %s9, 4
    %s16 = sphi 0, %s28
    %s17 = sphi 0, %s24
    %s18 = sphi 0, %s16
    %s19 = sphi 0, %s17
    %s20 = sphi 0, %s18
    %s21 = sphi 0, %s19
    %s33 = sphi 0, %s35
    %s36 = sphi 0, %s33
    %s37 = sphi 0, %s36
    %s53 = sphi 0, %s37
    %s57 = sphi 0, %s57
    %s59 = sphi 0, %s57
    %s60 = sphi 0, %s59
    %s74 = sphi 0, %s60
    %s78 = sphi 0, %s78
    %s80 = sphi 0, %s78
    %s81 = sphi 0, %s80
    %s95 = sphi 0, %s81
    %s103 = sphi 0, %s105
    %s106 = sphi 0, %s103
    %s107 = sphi 0, %s106
    %s123 = sphi 0, %s107
  $region4: #{outconv_forward.1} parent=0 // loop_header_branch
    %12 = sbr.rel (%p10) target = $region8
  $region5: #{outconv_forward.1} parent=0 // loop_body
    %s14 = ssub.s32 %s9, 1
    %s15 = ssub.s32 %s9, 2
    %s22 = sadd.s32 1, %s17
    %p23 = scmp.ge.s32.totalorder %s22, 1
    %s24 = scalar_select %p23, 0, %s22
    %s25 = sadd.s32 1, %s16
    %s26 = scalar_select %p23, %s25, %s16
    %p27 = scmp.ge.s32.totalorder %s26, 2
    %s28 = scalar_select %p27, 0, %s26
    %s29 = ssub.s32 %s16, %s28
    %s30 = ssub.s32 %s17, %s24
    %s31 = sor.u32 %s29, %s30
    %p32 = scmp.eq.s32.totalorder %s31, 0
    %s34 = sadd.s32 %s33, 1
    %s35 = scalar_select %p32, %s33, %s34
    %p38 = pneg %p32
    %p39 = scmp.eq.s32.totalorder %s9, 1
    %p40 = por %p38, %p39
    %p41 = scmp.ne.s32.totalorder %s33, %s36
    %p42 = scmp.eq.s32.totalorder %s9, 0
    %p43 = por %p41, %p42
    %p44 = scmp.ne.s32.totalorder %s33, %s36
    %p45 = scmp.eq.s32.totalorder %s14, 1
    %p46 = por %p44, %p45
    %p47 = scmp.ne.s32.totalorder %s36, %s37
    %p48 = scmp.eq.s32.totalorder %s14, 0
    %p49 = por %p47, %p48
    %p50 = scmp.ne.s32.totalorder %s36, %s37
    %p51 = scmp.eq.s32.totalorder %s15, 1
    %p52 = por %p50, %p51
    %p54 = scmp.ne.s32.totalorder %s37, %s53
    %p55 = scmp.eq.s32.totalorder %s15, 0
    %p56 = por %p54, %p55
    %s58 = sadd.s32 %s57, 1
    %p61 = scmp.eq.s32.totalorder %s9, 1
    %p62 = scmp.ne.s32.totalorder %s57, %s59
    %p63 = scmp.eq.s32.totalorder %s9, 0
    %p64 = por %p62, %p63
    %p65 = scmp.ne.s32.totalorder %s57, %s59
    %p66 = scmp.eq.s32.totalorder %s14, 1
    %p67 = por %p65, %p66
    %p68 = scmp.ne.s32.totalorder %s59, %s60
    %p69 = scmp.eq.s32.totalorder %s14, 0
    %p70 = por %p68, %p69
    %p71 = scmp.ne.s32.totalorder %s59, %s60
    %p72 = scmp.eq.s32.totalorder %s15, 1
    %p73 = por %p71, %p72
    %p75 = scmp.ne.s32.totalorder %s60, %s74
    %p76 = scmp.eq.s32.totalorder %s15, 0
    %p77 = por %p75, %p76
    %s79 = sadd.s32 %s78, 1
    %p82 = scmp.eq.s32.totalorder %s9, 1
    %p83 = scmp.ne.s32.totalorder %s78, %s80
    %p84 = scmp.eq.s32.totalorder %s9, 0
    %p85 = por %p83, %p84
    %p86 = scmp.ne.s32.totalorder %s78, %s80
    %p87 = scmp.eq.s32.totalorder %s14, 1
    %p88 = por %p86, %p87
    %p89 = scmp.ne.s32.totalorder %s80, %s81
    %p90 = scmp.eq.s32.totalorder %s14, 0
    %p91 = por %p89, %p90
    %p92 = scmp.ne.s32.totalorder %s80, %s81
    %p93 = scmp.eq.s32.totalorder %s15, 1
    %p94 = por %p92, %p93
    %p96 = scmp.ne.s32.totalorder %s81, %s95
    %p97 = scmp.eq.s32.totalorder %s15, 0
    %p98 = por %p96, %p97
    %s99 = ssub.s32 %s16, %s28
    %s100 = ssub.s32 %s17, %s24
    %s101 = sor.u32 %s99, %s100
    %p102 = scmp.eq.s32.totalorder %s101, 0
    %s104 = sadd.s32 %s103, 1
    %s105 = scalar_select %p102, %s103, %s104
    %p108 = pneg %p102
    %p109 = scmp.eq.s32.totalorder %s9, 1
    %p110 = por %p108, %p109
    %p111 = scmp.ne.s32.totalorder %s103, %s106
    %p112 = scmp.eq.s32.totalorder %s9, 0
    %p113 = por %p111, %p112
    %p114 = scmp.ne.s32.totalorder %s103, %s106
    %p115 = scmp.eq.s32.totalorder %s14, 1
    %p116 = por %p114, %p115
    %p117 = scmp.ne.s32.totalorder %s106, %s107
    %p118 = scmp.eq.s32.totalorder %s14, 0
    %p119 = por %p117, %p118
    %p120 = scmp.ne.s32.totalorder %s106, %s107
    %p121 = scmp.eq.s32.totalorder %s15, 1
    %p122 = por %p120, %p121
    %p124 = scmp.ne.s32.totalorder %s107, %s123
    %p125 = scmp.eq.s32.totalorder %s15, 0
    %p126 = por %p124, %p125
    %p127 = scmp.le.s32.totalorder 1, %s9
    %p128 = scmp.lt.s32.totalorder %s9, 3
    %p129 = pnand %p127, %p128
    %p130 = pneg %p129
    // Predicated region
    $region9: #{outconv_forward.1} parent=5 // pred_check
      _
    $region10: #{outconv_forward.1} parent=5 // pred_check_branch
      %132 = sbr.rel (%p129) target = $region12
    $region11: #{outconv_forward.1} parent=5 // pred_region
      %s133 = ssub.s32 %s9, 1
      // Predicated region
      $region13: #{outconv_forward.1} parent=11 // pred_check
        %p134 = pneg %p70
      $region14: #{outconv_forward.1} parent=11 // pred_check_branch
        %136 = sbr.rel (%p134) target = $region16
      $region15: #{outconv_forward.1} parent=11 // pred_region
        _
      $region16: #{outconv_forward.1} parent=11 // pred_fallthru
        _
      // Predicated region
      $region17: #{outconv_forward.1} parent=11 // pred_check
        %p137 = pneg %p91
      $region18: #{outconv_forward.1} parent=11 // pred_check_branch
        %139 = sbr.rel (%p137) target = $region20
      $region19: #{outconv_forward.1} parent=11 // pred_region
        _
      $region20: #{outconv_forward.1} parent=11 // pred_fallthru
        _
    $region12: #{outconv_forward.1} parent=5 // pred_fallthru
      _
    %p140 = scmp.lt.s32.totalorder %s9, 2
    // Predicated region
    $region21: #{outconv_forward.1} parent=5 // pred_check
      %p141 = pneg %p140
    $region22: #{outconv_forward.1} parent=5 // pred_check_branch
      %143 = sbr.rel (%p141) target = $region24
    $region23: #{outconv_forward.1} parent=5 // pred_region
      // Predicated region
      $region25: #{outconv_forward.1} parent=23 // pred_check
        %p144 = pneg %p43
      $region26: #{outconv_forward.1} parent=23 // pred_check_branch
        %146 = sbr.rel (%p144) target = $region28
      $region27: #{outconv_forward.1} parent=23 // pred_region
        %s147 = smul.u32 2, %s17
        %p148 = scmp.lt.s32.totalorder %s16, 1
        %s149 = scalar_select %p148, %s16, 1
        %p150 = scmp.lt.s32.totalorder %s147, 1
        %s151 = scalar_select %p150, %s147, 1
        %s152 = smul.addr %s149, 2
        %s153 = sadd.s32 %s151, %s152
        %s154 = smul.addr %s153, 4
        %s155 = scalar_lea.vmem %s0, %s154
        %s156 = smul.u32 2, %s17
      $region28: #{outconv_forward.1} parent=23 // pred_fallthru
        _
    $region24: #{outconv_forward.1} parent=5 // pred_fallthru
      _
    %p157 = scmp.le.s32.totalorder 1, %s9
    %p158 = scmp.lt.s32.totalorder %s9, 3
    %p159 = pnand %p157, %p158
    %p160 = pneg %p159
    // Predicated region
    $region29: #{outconv_forward.1} parent=5 // pred_check
      _
    $region30: #{outconv_forward.1} parent=5 // pred_check_branch
      %162 = sbr.rel (%p159) target = $region32
    $region31: #{outconv_forward.1} parent=5 // pred_region
      %s163 = ssub.s32 %s9, 1
      %s164 = smul.u32 2, %s19
      %p165 = scmp.lt.s32.totalorder %s18, 1
      %s166 = scalar_select %p165, %s18, 1
      %p167 = scmp.lt.s32.totalorder %s164, 1
      %s168 = scalar_select %p167, %s164, 1
      %s169 = smul.addr %s166, 2
      %s170 = sadd.s32 %s168, %s169
      %s171 = smul.addr %s170, 4
      %s172 = scalar_lea.vmem %s0, %s171
      %p173 = pneg %p49
      %p174 = pneg %p46
      %p175 = pneg %p70
      %p176 = pneg %p67
      %p177 = pneg %p91
      %p178 = pneg %p88
      %p179 = pneg %p119
      %p180 = pneg %p116
      %s181 = smul.u32 2, %s19
      %p182 = scmp.lt.s32.totalorder %s18, 1
      %s183 = scalar_select %p182, %s18, 1
      %p184 = scmp.lt.s32.totalorder %s181, 1
      %s185 = scalar_select %p184, %s181, 1
      %s186 = smul.addr %s183, 2
      %s187 = sadd.s32 %s185, %s186
      %s188 = smul.addr %s187, 4
      %s189 = scalar_lea.vmem %s3, %s188
      %s190 = smul.u32 2, %s19
      %p191 = scmp.lt.s32.totalorder %s18, 1
      %s192 = scalar_select %p191, %s18, 1
      %p193 = scmp.lt.s32.totalorder %s190, 1
      %s194 = scalar_select %p193, %s190, 1
      %s195 = smul.addr %s192, 2
      %s196 = sadd.s32 %s194, %s195
      %s197 = smul.addr %s196, 4
      %s198 = scalar_lea.vmem %s0, %s197
      %s199 = smul.u32 2, %s19
      %s200 = smul.u32 2, %s19
      %p201 = scmp.lt.s32.totalorder %s18, 1
      %s202 = scalar_select %p201, %s18, 1
      %p203 = scmp.lt.s32.totalorder %s200, 1
      %s204 = scalar_select %p203, %s200, 1
      %s205 = smul.addr %s202, 2
      %s206 = sadd.s32 %s204, %s205
      %s207 = smul.addr %s206, 4
      %s208 = scalar_lea.vmem %s3, %s207
      %s209 = smul.u32 2, %s19
      %v210 = vld [vmem:[%s198] sm:$0xff]
      %v211 = vld [vmem:[%s1] sm:$0x7]
      %213 = vset.pattern.permute.xlu0 0
      %214 = vperm.xlu0 %213, %v211
      %v215 = vpop.permute.xlu0 %214
      %v218 = vperm.slane %v210, 0
      %v219 = vperm.slane %v210, 4
      %v222 = vperm.slane %v218, 0
      %v223 = vperm.slane %v219, 0
      %v224 = vmul.f32 %v215, %v222
      %v225 = vmul.f32 %v215, %v223
      %v226 = vadd.f32 %v224, 0.0
      %v227 = vadd.f32 %v225, 0.0
      %228 = vset.pattern.permute.xlu0 1
      %229 = vperm.xlu0 %228, %v211
      %v230 = vpop.permute.xlu0 %229
      %v232 = vperm.slane %v210, 1
      %v233 = vperm.slane %v210, 5
      %v236 = vperm.slane %v232, 1
      %v237 = vperm.slane %v233, 1
      %v238 = vmul.f32 %v230, %v236
      %v239 = vmul.f32 %v230, %v237
      %v240 = vadd.f32 %v226, %v238
      %v241 = vadd.f32 %v227, %v239
      %242 = vset.pattern.permute.xlu0 2
      %243 = vperm.xlu0 %242, %v211
      %v244 = vpop.permute.xlu0 %243
      %v246 = vperm.slane %v210, 2
      %v247 = vperm.slane %v210, 6
      %v250 = vperm.slane %v246, 2
      %v251 = vperm.slane %v247, 2
      %v252 = vmul.f32 %v244, %v250
      %v253 = vmul.f32 %v244, %v251
      %v254 = vadd.f32 %v240, %v252
      %v255 = vadd.f32 %v241, %v253
      %256 = vset.pattern.permute.xlu0 3
      %257 = vperm.xlu0 %256, %v211
      %v258 = vpop.permute.xlu0 %257
      %v260 = vperm.slane %v210, 3
      %v261 = vperm.slane %v210, 7
      %v264 = vperm.slane %v260, 3
      %v265 = vperm.slane %v261, 3
      %v266 = vmul.f32 %v258, %v264
      %v267 = vmul.f32 %v258, %v265
      %v268 = vadd.f32 %v254, %v266
      %v269 = vadd.f32 %v255, %v267
      %v270 = vld [vmem:[%s2] sm:$0x7]
      %272 = vset.pattern.permute.xlu0 0
      %273 = vperm.xlu0 %272, %v270
      %v274 = vpop.permute.xlu0 %273
      %v276 = vadd.f32 %v268, %v274
      %v277 = vadd.f32 %v269, %v274
      %v280 = vrot.slane %v277, 4
      %vm281 = vcmask 1043456
      %v282 = vsel %vm281, %v276, %v280
      %284 = vst [vmem:[%s208] sm:$0x77] %v282
      %s285 = smul.u32 2, %s19
      %p286 = scmp.lt.s32.totalorder %s18, 1
      %s287 = scalar_select %p286, %s18, 1
      %p288 = scmp.lt.s32.totalorder %s285, 1
      %s289 = scalar_select %p288, %s285, 1
      %s290 = smul.addr %s287, 2
      %s291 = sadd.s32 %s289, %s290
      %s292 = smul.addr %s291, 4
      %s293 = scalar_lea.vmem %s3, %s292
      // Predicated region
      $region33: #{outconv_forward.1} parent=31 // pred_check
        %p294 = pneg %p116
      $region34: #{outconv_forward.1} parent=31 // pred_check_branch
        %296 = sbr.rel (%p294) target = $region36
      $region35: #{outconv_forward.1} parent=31 // pred_region
        %s297 = smul.u32 2, %s19
      $region36: #{outconv_forward.1} parent=31 // pred_fallthru
        _
    $region32: #{outconv_forward.1} parent=5 // pred_fallthru
      _
    %p298 = scmp.le.s32.totalorder 2, %s9
    // Predicated region
    $region37: #{outconv_forward.1} parent=5 // pred_check
      %p299 = pneg %p298
    $region38: #{outconv_forward.1} parent=5 // pred_check_branch
      %301 = sbr.rel (%p299) target = $region40
    $region39: #{outconv_forward.1} parent=5 // pred_region
      %s302 = ssub.s32 %s9, 2
      // Predicated region
      $region41: #{outconv_forward.1} parent=39 // pred_check
        %p303 = pneg %p122
      $region42: #{outconv_forward.1} parent=39 // pred_check_branch
        %305 = sbr.rel (%p303) target = $region44
      $region43: #{outconv_forward.1} parent=39 // pred_region
        %s306 = smul.u32 2, %s21
        %p307 = scmp.lt.s32.totalorder %s20, 1
        %s308 = scalar_select %p307, %s20, 1
        %p309 = scmp.lt.s32.totalorder %s306, 1
        %s310 = scalar_select %p309, %s306, 1
        %s311 = smul.addr %s308, 2
        %s312 = sadd.s32 %s310, %s311
        %s313 = smul.addr %s312, 4
        %s314 = scalar_lea.vmem %s3, %s313
      $region44: #{outconv_forward.1} parent=39 // pred_fallthru
        _
    $region40: #{outconv_forward.1} parent=5 // pred_fallthru
      _
  $region6: #{outconv_forward.1} parent=0 // loop_footer
    %s13 = sadd.s32 1, %s9
  $region7: #{outconv_forward.1} parent=0 // loop_footer_branch
    %8 = sbr.rel target = $region3
  $region8: #{outconv_forward.1} parent=0 // loop_exit
    _

</llo_original>
